<compile_context>
chip_gen: v7x
topology: tpu7x:2x2x1
jax: 0.10.0
libtpu: 0.0.40
codegen_flags: <defaults>
</compile_context>

<pallas_src>
import functools

import jax
import jax.numpy as jnp
from jax import lax
from jax.experimental import pallas as pl
from jax.experimental.pallas import tpu as pltpu

# Row / KV tile sizes: multiples of the (8,128) vreg tile and of the MXU dims
# on all of v5e/v6e/v7x.  With resident bf16 weights this plan fits well under
# v5e's 16 MiB default scoped VMEM and v7x's 64 MiB physical VMEM.
TM = 128
TK = 128
_VMEM_LIMIT = 32 * 1024 * 1024


def _layernorm(z, g, b, eps):
    """PyTorch-style LayerNorm over the last dim (biased variance), f32."""
    mu = jnp.mean(z, axis=-1, keepdims=True)
    var = jnp.mean(jnp.square(z - mu), axis=-1, keepdims=True)
    return (z - mu) * lax.rsqrt(var + eps) * g + b


# ---------------------------------------------------------------------------
# Kernel 1: node embedding  (Linear, bias=False)
# ---------------------------------------------------------------------------

def _embed_kernel(x_ref, w_ref, o_ref):
    o_ref[...] = jnp.dot(x_ref[...].astype(jnp.bfloat16), w_ref[...],
                         preferred_element_type=jnp.float32).astype(o_ref.dtype)


def embed(x, w_bf16):
    N, Fin = x.shape
    D = w_bf16.shape[1]
    assert N % TM == 0
    return pl.pallas_call(
        _embed_kernel,
        out_shape=jax.ShapeDtypeStruct((N, D), jnp.float32),
        grid=(N // TM,),
        in_specs=[pl.BlockSpec((TM, Fin), lambda i: (i, 0)),
                  pl.BlockSpec((Fin, D), lambda i: (0, 0))],   # resident weight
        out_specs=pl.BlockSpec((TM, D), lambda i: (i, 0)),
        compiler_params=pltpu.CompilerParams(
            dimension_semantics=("parallel",),
            vmem_limit_bytes=_VMEM_LIMIT),
    )(x, w_bf16)


# ---------------------------------------------------------------------------
# Kernel 2: fused QKV projection (one [D, 3D] matmul), row-tiled
# ---------------------------------------------------------------------------

def _qkv_kernel(h_ref, wqkv_ref, bqkv_ref, q_ref, k_ref, v_ref):
    D = q_ref.shape[-1]
    qkv = jnp.dot(h_ref[...].astype(jnp.bfloat16), wqkv_ref[...],
                  preferred_element_type=jnp.float32) + bqkv_ref[...]
    qkv = qkv.astype(jnp.bfloat16)
    q_ref[...] = qkv[:, 0 * D:1 * D]
    k_ref[...] = qkv[:, 1 * D:2 * D]
    v_ref[...] = qkv[:, 2 * D:3 * D]


def qkv_project(h, lp):
    N, D = h.shape
    assert N % TM == 0
    out = jax.ShapeDtypeStruct((N, D), jnp.bfloat16)
    return pl.pallas_call(
        _qkv_kernel,
        out_shape=(out, out, out),
        grid=(N // TM,),
        in_specs=[pl.BlockSpec((TM, D), lambda i: (i, 0)),
                  pl.BlockSpec((D, 3 * D), lambda i: (0, 0)),   # resident
                  pl.BlockSpec((1, 3 * D), lambda i: (0, 0))],
        out_specs=(pl.BlockSpec((TM, D), lambda i: (i, 0)),) * 3,
        compiler_params=pltpu.CompilerParams(
            dimension_semantics=("parallel",),
            vmem_limit_bytes=_VMEM_LIMIT),
    )(h, lp["wqkv"], lp["bqkv"])


# ---------------------------------------------------------------------------
# Kernel 3: flash-style attention + Wo + residual/LN1 + FFN + residual/LN2
#   grid = (query row tiles [parallel], kv tiles [arbitrary])
# ---------------------------------------------------------------------------

def _attn_ffn_kernel(q_ref, k_ref, v_ref, h_ref, wo_ref, w1_ref, w2_ref,
                     vecd_ref, b1_ref, o_ref, m_sc, l_sc, acc_sc,
                     *, num_heads, eps):
    kv = pl.program_id(1)

    @pl.when(kv == 0)
    def _():
        m_sc[...] = jnp.full(m_sc.shape, -jnp.inf, dtype=jnp.float32)
        l_sc[...] = jnp.zeros(l_sc.shape, dtype=jnp.float32)
        acc_sc[...] = jnp.zeros(acc_sc.shape, dtype=jnp.float32)

    q = q_ref[...]                            # [TM, D] bf16 (1/sqrt(dh) pre-folded)
    k = k_ref[...]                            # [TK, D] bf16
    v = v_ref[...]                            # [TK, D] bf16
    D = q.shape[1]
    dh = D // num_heads                       # demo picks dh == 128 (lane-aligned)

    # Online-softmax update per head for this KV tile.  All matmuls are bf16
    # operands with f32 accumulation.
    for hd in range(num_heads):
        lo, hi = hd * dh, (hd + 1) * dh
        s = lax.dot_general(q[:, lo:hi], k[:, lo:hi],
                            (((1,), (1,)), ((), ())),
                            preferred_element_type=jnp.float32)       # [TM, TK]
        m_prev = m_sc[:, hd:hd + 1]
        m_new = jnp.maximum(m_prev, jnp.max(s, axis=-1, keepdims=True))
        alpha = jnp.exp(m_prev - m_new)
        p = jnp.exp(s - m_new)                                        # unnormalized
        l_sc[:, hd:hd + 1] = alpha * l_sc[:, hd:hd + 1] + jnp.sum(
            p, axis=-1, keepdims=True)
        acc_sc[:, lo:hi] = (alpha * acc_sc[:, lo:hi]
                            + jnp.dot(p.astype(jnp.bfloat16), v[:, lo:hi],
                                      preferred_element_type=jnp.float32))
        m_sc[:, hd:hd + 1] = m_new

    @pl.when(kv == pl.num_programs(1) - 1)
    def _():
        # Deferred softmax normalization: scale the [TM, dh] accumulator (not
        # [TM, N] probabilities) with an EUP approx reciprocal.
        inv_l = pl.reciprocal(l_sc[...], approx=True)                 # [TM, H]
        attn = jnp.concatenate(
            [acc_sc[:, hd * dh:(hd + 1) * dh] * inv_l[:, hd:hd + 1]
             for hd in range(num_heads)], axis=-1)                    # [TM, D] f32

        bo, ln1g, ln1b = vecd_ref[0:1, :], vecd_ref[1:2, :], vecd_ref[2:3, :]
        b2, ln2g, ln2b = vecd_ref[3:4, :], vecd_ref[4:5, :], vecd_ref[5:6, :]

        # Single full-D output projection (no per-head K=dh contractions).
        attn = jnp.dot(attn.astype(jnp.bfloat16), wo_ref[...],
                       preferred_element_type=jnp.float32) + bo

        h = h_ref[...]                                                # f32 residual
        z1 = _layernorm(h + attn, ln1g, ln1b, eps)

        f = jnp.dot(z1.astype(jnp.bfloat16), w1_ref[...],
                    preferred_element_type=jnp.float32) + b1_ref[...]
        f = jnp.maximum(f, 0.0)
        f2 = jnp.dot(f.astype(jnp.bfloat16), w2_ref[...],
                     preferred_element_type=jnp.float32) + b2
        z2 = _layernorm(z1 + f2, ln2g, ln2b, eps)
        o_ref[...] = z2.astype(o_ref.dtype)


def attn_ffn(q, k, v, h, lp, num_heads, eps=1e-5):
    N, D = h.shape
    F = lp["w1"].shape[1]
    assert N % TM == 0 and N % TK == 0 and D % num_heads == 0
    kernel = functools.partial(_attn_ffn_kernel, num_heads=num_heads, eps=eps)
    return pl.pallas_call(
        kernel,
        out_shape=jax.ShapeDtypeStruct((N, D), jnp.float32),
        grid=(N // TM, N // TK),
        in_specs=[
            pl.BlockSpec((TM, D), lambda i, kk: (i, 0)),      # q tile
            pl.BlockSpec((TK, D), lambda i, kk: (kk, 0)),     # k tile
            pl.BlockSpec((TK, D), lambda i, kk: (kk, 0)),     # v tile
            pl.BlockSpec((TM, D), lambda i, kk: (i, 0)),      # h (residual)
            pl.BlockSpec((D, D), lambda i, kk: (0, 0)),       # wo (resident)
            pl.BlockSpec((D, F), lambda i, kk: (0, 0)),       # w1 (resident)
            pl.BlockSpec((F, D), lambda i, kk: (0, 0)),       # w2 (resident)
            pl.BlockSpec((6, D), lambda i, kk: (0, 0)),       # packed D-wide vecs
            pl.BlockSpec((1, F), lambda i, kk: (0, 0)),       # b1
        ],
        out_specs=pl.BlockSpec((TM, D), lambda i, kk: (i, 0)),
        scratch_shapes=[pltpu.VMEM((TM, num_heads), jnp.float32),   # running max
                        pltpu.VMEM((TM, num_heads), jnp.float32),   # running sum
                        pltpu.VMEM((TM, D), jnp.float32)],          # accumulator
        compiler_params=pltpu.CompilerParams(
            dimension_semantics=("parallel", "arbitrary"),
            vmem_limit_bytes=_VMEM_LIMIT),
        input_output_aliases={3: 0},   # h is dead after the layer -> reuse buffer
    )(q, k, v, h, lp["wo"], lp["w1"], lp["w2"], lp["vec_d"], lp["b1"])


# ---------------------------------------------------------------------------
# Parameters: PyTorch-equivalent init + TPU-side preparation
# ---------------------------------------------------------------------------

def init_params(key, in_size, d_model, num_heads, dim_feedforward, num_layers):
    def nrm(k, shape, scale=0.05):
        return scale * jax.random.normal(k, shape, dtype=jnp.float32)

    keys = jax.random.split(key, 1 + num_layers)
    params = {"embedding_w": nrm(keys[0], (in_size, d_model)), "layers": []}
    for l in range(num_layers):
        lk = jax.random.split(keys[1 + l], 12)
        params["layers"].append({
            "wqkv": nrm(lk[0], (d_model, 3 * d_model)),
            "bqkv": nrm(lk[1], (3 * d_model,), 0.02),
            "wo": nrm(lk[2], (d_model, d_model)),
            "bo": nrm(lk[3], (d_model,), 0.02),
            "w1": nrm(lk[4], (d_model, dim_feedforward)),
            "b1": nrm(lk[5], (dim_feedforward,), 0.02),
            "w2": nrm(lk[6], (dim_feedforward, d_model)),
            "b2": nrm(lk[7], (d_model,), 0.02),
            "ln1_g": 1.0 + nrm(lk[8], (d_model,), 0.02),
            "ln1_b": nrm(lk[9], (d_model,), 0.02),
            "ln2_g": 1.0 + nrm(lk[10], (d_model,), 0.02),
            "ln2_b": nrm(lk[11], (d_model,), 0.02),
        })
    return params


def prepare_params(raw, num_heads):
    """One-time transform: fold 1/sqrt(dh) into Q, cast weights to bf16,
    pack bias/gain vectors."""
    D = raw["embedding_w"].shape[1]
    dh = D // num_heads
    scale = 1.0 / float(dh) ** 0.5
    prepped = {"embedding_w": raw["embedding_w"].astype(jnp.bfloat16),
               "layers": []}
    for lp in raw["layers"]:
        F = lp["w1"].shape[1]
        wqkv = lp["wqkv"].at[:, :D].multiply(scale)
        bqkv = lp["bqkv"].at[:D].multiply(scale)
        prepped["layers"].append({
            "wqkv": wqkv.astype(jnp.bfloat16),
            "bqkv": bqkv.reshape(1, 3 * D).astype(jnp.float32),
            "wo": lp["wo"].astype(jnp.bfloat16),
            "w1": lp["w1"].astype(jnp.bfloat16),
            "w2": lp["w2"].astype(jnp.bfloat16),
            # packed rows: bo, ln1_g, ln1_b, b2, ln2_g, ln2_b
            "vec_d": jnp.stack([lp["bo"], lp["ln1_g"], lp["ln1_b"],
                                lp["b2"], lp["ln2_g"], lp["ln2_b"]]
                               ).astype(jnp.float32),
            "b1": lp["b1"].reshape(1, F).astype(jnp.float32),
        })
    return prepped


# ---------------------------------------------------------------------------
# Forward passes (Pallas + pure-JAX reference)
# ---------------------------------------------------------------------------

def graph_transformer_forward(params, x, num_heads):
    """x: [N, in_size] node features; single graph => complete-graph attention."""
    h = embed(x, params["embedding_w"])
    for lp in params["layers"]:
        q, k, v = qkv_project(h, lp)
        h = attn_ffn(q, k, v, h, lp, num_heads)
    # encoder.norm is None; GraphTransformer.forward returns node features
    # without pooling.
    return h


def reference_forward(params, x, num_heads, eps=1e-5):
    """Pure-JAX f32 reference (exact softmax/division) on the same weights."""
    f32 = jnp.float32

    def ln(z, g, b):
        mu = jnp.mean(z, axis=-1, keepdims=True)
        var = jnp.mean(jnp.square(z - mu), axis=-1, keepdims=True)
        return (z - mu) / jnp.sqrt(var + eps) * g + b

    h = x.astype(f32) @ params["embedding_w"].astype(f32)
    for lp in params["layers"]:
        D = h.shape[1]
        dh = D // num_heads
        qkv = h @ lp["wqkv"].astype(f32) + lp["bqkv"][0]
        q, k, v = qkv[:, :D], qkv[:, D:2 * D], qkv[:, 2 * D:]
        heads = []
        for hd in range(num_heads):
            sl = slice(hd * dh, (hd + 1) * dh)
            s = q[:, sl] @ k[:, sl].T           # scale already folded into Q
            heads.append(jax.nn.softmax(s, axis=-1) @ v[:, sl])
        vd = lp["vec_d"]
        attn = jnp.concatenate(heads, -1) @ lp["wo"].astype(f32) + vd[0]
        z1 = ln(h + attn, vd[1], vd[2])
        f = jnp.maximum(z1 @ lp["w1"].astype(f32) + lp["b1"][0], 0.0)
        f2 = f @ lp["w2"].astype(f32) + vd[3]
        h = ln(z1 + f2, vd[4], vd[5])
    return h


# ---------------------------------------------------------------------------
# Demo
# ---------------------------------------------------------------------------

if __name__ == "__main__":
    N = 256                 # nodes (single graph, ptr = [0, N]); 2 row tiles
    in_size = 64            # raw node feature dim
    d_model = 256           # multiple of 128 -> lane-dense stores
    num_heads = 2           # dh = 128 -> lane-aligned per-head slices
    dim_feedforward = 256
    num_layers = 2

    key = jax.random.PRNGKey(0)
    kx, kp = jax.random.split(key)
    x = jax.random.normal(kx, (N, in_size), dtype=jnp.float32)

    raw_params = init_params(kp, in_size, d_model, num_heads,
                             dim_feedforward, num_layers)
    params = prepare_params(raw_params, num_heads)

    out = graph_transformer_forward(params, x, num_heads)
    out = jax.block_until_ready(out)
    assert out.shape == (N, d_model), out.shape
    assert bool(jnp.all(jnp.isfinite(out)))

    # Numerical reference (same bf16-stored weights, f32 math, exact softmax).
    # Tolerance accounts for bf16 activation casts + pl.reciprocal(approx=True).
    ref = reference_forward(params, x, num_heads)
    max_err = float(jnp.max(jnp.abs(out - ref)))
    assert max_err < 3e-2, f"max abs error vs reference: {max_err}"

    print("KERNEL_OK")
</pallas_src>

<mosaic_0001>
module attributes {stable_mosaic.version = 11 : i64} {
  func.func @_embed_kernel(%arg0: i32, %arg1: memref<128x64xf32, #tpu.memory_space<vmem>>, %arg2: memref<64x256xbf16, #tpu.memory_space<vmem>>, %arg3: memref<128x256xf32, #tpu.memory_space<vmem>>) attributes {dimension_semantics = [#tpu.dimension_semantics<parallel>], iteration_bounds = array<i64: 2>, scalar_prefetch = 0 : i64, scratch_operands = 0 : i64, tpu.core_type = #tpu.core_type<tc>, window_params = [{transform_indices = @transform_0, window_bounds = array<i64: 128, 64>}, {pipeline_mode = #tpu.pipeline_mode<synchronous>, transform_indices = @transform_1, window_bounds = array<i64: 64, 256>}, {transform_indices = @transform_2, window_bounds = array<i64: 128, 256>}]} {
    %c0 = arith.constant 0 : index
    %c0_0 = arith.constant 0 : index
    %0 = vector.load %arg1[%c0, %c0_0] : memref<128x64xf32, #tpu.memory_space<vmem>>, vector<128x64xf32>
    %1 = arith.truncf %0 : vector<128x64xf32> to vector<128x64xbf16>
    %c0_1 = arith.constant 0 : index
    %c0_2 = arith.constant 0 : index
    %2 = vector.load %arg2[%c0_1, %c0_2] : memref<64x256xbf16, #tpu.memory_space<vmem>>, vector<64x256xbf16>
    %cst = arith.constant dense<0.000000e+00> : vector<128x256xf32>
    %3 = tpu.matmul %1, %2, %cst {dimension_numbers = #tpu.dot_dimension_numbers<[1], [0], [0], [1], [0, 0, 1, 1], [], []>} : vector<128x64xbf16>, vector<64x256xbf16>, vector<128x256xf32> -> vector<128x256xf32>
    %c0_3 = arith.constant 0 : index
    %c0_4 = arith.constant 0 : index
    %4 = vector.load %arg3[%c0_3, %c0_4] : memref<128x256xf32, #tpu.memory_space<vmem>>, vector<128x256xf32>
    tpu.vector_store %arg3[%c0_3, %c0_4], %3 {strides = array<i32>} : memref<128x256xf32, #tpu.memory_space<vmem>>, vector<128x256xf32>,
    return
  }
  func.func @transform_0(%arg0: i32) -> (i32, i32) {
    %c0_i32 = arith.constant 0 : i32
    %c0_i32_0 = arith.constant 0 : i32
    return %arg0, %c0_i32 : i32, i32
  }
  func.func @transform_1(%arg0: i32) -> (i32, i32) {
    %c0_i32 = arith.constant 0 : i32
    %c0_i32_0 = arith.constant 0 : i32
    %c0_i32_1 = arith.constant 0 : i32
    return %c0_i32, %c0_i32_0 : i32, i32
  }
  func.func @transform_2(%arg0: i32) -> (i32, i32) {
    %c0_i32 = arith.constant 0 : i32
    %c0_i32_0 = arith.constant 0 : i32
    return %arg0, %c0_i32 : i32, i32
  }
}

</mosaic_0001>

<llo_original>
// kernel: tpu_custom_call.1
$region0: #{tpu_custom_call.1}
  #allocation0 [shape = 'u32[]', space=smem, size = 0x4, offset = 0x4, fixed_abs, tag = 'smem constant byte address 0x4 - core index']
  #allocation1 [shape = 'u32[144,128]{1,0:T(1,128)}', space=vmem, size = 0x12000, scoped, tag = 'internal scratch']
  %s0 = inlined_call_operand.vmem [shape: f32[256,64], index: 0, kind: input, shape index: {}]
  %s1 = inlined_call_operand.vmem [shape: bf16[64,256], index: 1, kind: input, shape index: {}]
  %s2 = inlined_call_operand.hbm [shape: f32[256,256], index: 2, kind: output, shape index: {}]
  %s3 = sld [smem:[#allocation0]]
  $region41: #{tpu_custom_call.1} parent=0
    _
  %s5 = ssub.s32 1, %s3
  %s6 = scalar_select 0, %s5, %s3
  $region1: #{tpu_custom_call.1} parent=0
    #allocation2 [shape = 'u8[262144]{0}', space=vmem, size = 0x40000, scoped, tag = 'output window, operand 0']
    #allocation3 [shape = 's32[2]{0}', space=sflag, size = 0x8, scoped, tag = 'scoped memory for tpu_custom_call.1']
    %7 = vsyncpa [#allocation3], 0
    %s8 = scalar_lea.sflag [#allocation3], 1
    %9 = vsyncpa %s8, 0
    loop: start=0, step=1, limit=4
    $region2: #{tpu_custom_call.1} parent=1 // loop_pre_header
      _
    $region3: #{tpu_custom_call.1} parent=1 // loop_header
      %s11 = sphi 0, %s15
      %p12 = scmp.ge.s32.totalorder %s11, 4
      %s21 = sphi 0, %s23
      %s24 = sphi 0, %s21
      %s25 = sphi 0, %s24
      %s41 = sphi 0, %s25
      %s45 = sphi 0, %s45
      %s47 = sphi 0, %s45
      %s48 = sphi 0, %s47
      %s62 = sphi 0, %s48
      %s68 = sphi 0, %s70
      %s71 = sphi 0, %s68
      %s72 = sphi 0, %s71
      %s88 = sphi 0, %s72
    $region4: #{tpu_custom_call.1} parent=1 // loop_header_branch
      %14 = sbr.rel (%p12) target = $region8
    $region5: #{tpu_custom_call.1} parent=1 // loop_body
      %s16 = ssub.s32 %s11, 1
      %s17 = ssub.s32 %s11, 2
      %s18 = sadd.s32 %s11, 1
      %s19 = ssub.s32 %s11, %s18
      %p20 = scmp.eq.s32.totalorder %s19, 0
      %s22 = sadd.s32 %s21, 1
      %s23 = scalar_select %p20, %s21, %s22
      %p26 = pneg %p20
      %p27 = scmp.eq.s32.totalorder %s11, 1
      %p28 = por %p26, %p27
      %p29 = scmp.ne.s32.totalorder %s21, %s24
      %p30 = scmp.eq.s32.totalorder %s11, 0
      %p31 = por %p29, %p30
      %p32 = scmp.ne.s32.totalorder %s21, %s24
      %p33 = scmp.eq.s32.totalorder %s16, 1
      %p34 = por %p32, %p33
      %p35 = scmp.ne.s32.totalorder %s24, %s25
      %p36 = scmp.eq.s32.totalorder %s16, 0
      %p37 = por %p35, %p36
      %p38 = scmp.ne.s32.totalorder %s24, %s25
      %p39 = scmp.eq.s32.totalorder %s17, 1
      %p40 = por %p38, %p39
      %p42 = scmp.ne.s32.totalorder %s25, %s41
      %p43 = scmp.eq.s32.totalorder %s17, 0
      %p44 = por %p42, %p43
      %s46 = sadd.s32 %s45, 1
      %p49 = scmp.eq.s32.totalorder %s11, 1
      %p50 = scmp.ne.s32.totalorder %s45, %s47
      %p51 = scmp.eq.s32.totalorder %s11, 0
      %p52 = por %p50, %p51
      %p53 = scmp.ne.s32.totalorder %s45, %s47
      %p54 = scmp.eq.s32.totalorder %s16, 1
      %p55 = por %p53, %p54
      %p56 = scmp.ne.s32.totalorder %s47, %s48
      %p57 = scmp.eq.s32.totalorder %s16, 0
      %p58 = por %p56, %p57
      %p59 = scmp.ne.s32.totalorder %s47, %s48
      %p60 = scmp.eq.s32.totalorder %s17, 1
      %p61 = por %p59, %p60
      %p63 = scmp.ne.s32.totalorder %s48, %s62
      %p64 = scmp.eq.s32.totalorder %s17, 0
      %p65 = por %p63, %p64
      %s66 = ssub.s32 %s11, %s18
      %p67 = scmp.eq.s32.totalorder %s66, 0
      %s69 = sadd.s32 %s68, 1
      %s70 = scalar_select %p67, %s68, %s69
      %p73 = pneg %p67
      %p74 = scmp.eq.s32.totalorder %s11, 1
      %p75 = por %p73, %p74
      %p76 = scmp.ne.s32.totalorder %s68, %s71
      %p77 = scmp.eq.s32.totalorder %s11, 0
      %p78 = por %p76, %p77
      %p79 = scmp.ne.s32.totalorder %s68, %s71
      %p80 = scmp.eq.s32.totalorder %s16, 1
      %p81 = por %p79, %p80
      %p82 = scmp.ne.s32.totalorder %s71, %s72
      %p83 = scmp.eq.s32.totalorder %s16, 0
      %p84 = por %p82, %p83
      %p85 = scmp.ne.s32.totalorder %s71, %s72
      %p86 = scmp.eq.s32.totalorder %s17, 1
      %p87 = por %p85, %p86
      %p89 = scmp.ne.s32.totalorder %s72, %s88
      %p90 = scmp.eq.s32.totalorder %s17, 0
      %p91 = por %p89, %p90
      %p92 = scmp.le.s32.totalorder 1, %s11
      %p93 = scmp.lt.s32.totalorder %s11, 3
      %p94 = pnand %p92, %p93
      %p95 = pneg %p94
      // Predicated region
      $region9: #{tpu_custom_call.1} parent=5 // pred_check
        _
      $region10: #{tpu_custom_call.1} parent=5 // pred_check_branch
        %97 = sbr.rel (%p94) target = $region12
      $region11: #{tpu_custom_call.1} parent=5 // pred_region
        %s98 = ssub.s32 %s11, 1
        // Predicated region
        $region13: #{tpu_custom_call.1} parent=11 // pred_check
          %p99 = pneg %p58
        $region14: #{tpu_custom_call.1} parent=11 // pred_check_branch
          %101 = sbr.rel (%p99) target = $region16
        $region15: #{tpu_custom_call.1} parent=11 // pred_region
          _
        $region16: #{tpu_custom_call.1} parent=11 // pred_fallthru
          _
      $region12: #{tpu_custom_call.1} parent=5 // pred_fallthru
        _
      %p102 = scmp.lt.s32.totalorder %s11, 2
      // Predicated region
      $region17: #{tpu_custom_call.1} parent=5 // pred_check
        %p103 = pneg %p102
      $region18: #{tpu_custom_call.1} parent=5 // pred_check_branch
        %105 = sbr.rel (%p103) target = $region20
      $region19: #{tpu_custom_call.1} parent=5 // pred_region
        // Predicated region
        $region21: #{tpu_custom_call.1} parent=19 // pred_check
          %p106 = pneg %p31
        $region22: #{tpu_custom_call.1} parent=19 // pred_check_branch
          %108 = sbr.rel (%p106) target = $region24
        $region23: #{tpu_custom_call.1} parent=19 // pred_region
          %s109 = smul.u32 16, %s11
          %p110 = scmp.lt.s32.totalorder %s109, 31
          %s111 = scalar_select %p110, %s109, 31
          %s112 = smul.addr %s111, 8
          %s113 = scalar_lea.vmem %s0, %s112
          %s114 = smul.u32 16, %s11
        $region24: #{tpu_custom_call.1} parent=19 // pred_fallthru
          _
      $region20: #{tpu_custom_call.1} parent=5 // pred_fallthru
        _
      %p115 = scmp.le.s32.totalorder 1, %s11
      %p116 = scmp.lt.s32.totalorder %s11, 3
      %p117 = pnand %p115, %p116
      %p118 = pneg %p117
      // Predicated region
      $region25: #{tpu_custom_call.1} parent=5 // pred_check
        _
      $region26: #{tpu_custom_call.1} parent=5 // pred_check_branch
        %120 = sbr.rel (%p117) target = $region28
      $region27: #{tpu_custom_call.1} parent=5 // pred_region
        %s121 = ssub.s32 %s11, 1
        %s122 = smul.u32 16, %s16
        %p123 = scmp.lt.s32.totalorder %s122, 31
        %s124 = scalar_select %p123, %s122, 31
        %s125 = smul.addr %s124, 8
        %s126 = scalar_lea.vmem %s0, %s125
        %p127 = pneg %p37
        %p128 = pneg %p34
        %p129 = pneg %p58
        %p130 = pneg %p55
        %p131 = pneg %p84
        %p132 = pneg %p81
        %s133 = sand.u32 %s71, 1
        %s134 = scalar_lea.sflag [#allocation3], %s133
        %s135 = sand.u32 %s71, 1
        %s136 = smul.addr %s135, 256
        %s137 = scalar_lea.vmem [#allocation2], %s136
        %s138 = smul.u32 16, %s16
        %p139 = scmp.lt.s32.totalorder %s138, 31
        %s140 = scalar_select %p139, %s138, 31
        %s141 = smul.addr %s140, 8
        %s142 = scalar_lea.vmem %s0, %s141
        %s143 = smul.u32 16, %s16
        %s144 = smul.u32 16, %s16
        %v146 = vld [vmem:[%s142] sm:$0xff]
        %v147 = vld [vmem:[%s142 + $0x8] sm:$0xff]
        %v148 = vld [vmem:[%s142 + $0x10] sm:$0xff]
        %v149 = vld [vmem:[%s142 + $0x18] sm:$0xff]
        %v150 = vld [vmem:[%s142 + $0x20] sm:$0xff]
        %v151 = vld [vmem:[%s142 + $0x28] sm:$0xff]
        %v152 = vld [vmem:[%s142 + $0x30] sm:$0xff]
        %v153 = vld [vmem:[%s142 + $0x38] sm:$0xff]
        %v154 = vld [vmem:[%s142 + $0x40] sm:$0xff]
        %v155 = vld [vmem:[%s142 + $0x48] sm:$0xff]
        %v156 = vld [vmem:[%s142 + $0x50] sm:$0xff]
        %v157 = vld [vmem:[%s142 + $0x58] sm:$0xff]
        %v158 = vld [vmem:[%s142 + $0x60] sm:$0xff]
        %v159 = vld [vmem:[%s142 + $0x68] sm:$0xff]
        %v160 = vld [vmem:[%s142 + $0x70] sm:$0xff]
        %v161 = vld [vmem:[%s142 + $0x78] sm:$0xff]
        %v162 = vpack.c.bf16 %v147, %v146
        %v163 = vpack.c.bf16 %v149, %v148
        %v164 = vpack.c.bf16 %v151, %v150
        %v165 = vpack.c.bf16 %v153, %v152
        %v166 = vpack.c.bf16 %v155, %v154
        %v167 = vpack.c.bf16 %v157, %v156
        %v168 = vpack.c.bf16 %v159, %v158
        %v169 = vpack.c.bf16 %v161, %v160
        %v170 = vld [vmem:[%s1] sm:$0xff]
        %v171 = vld [vmem:[%s1 + $0x8] sm:$0xff]
        %v172 = vld [vmem:[%s1 + $0x10] sm:$0xff]
        %v173 = vld [vmem:[%s1 + $0x18] sm:$0xff]
        %v174 = vld [vmem:[%s1 + $0x20] sm:$0xff]
        %v175 = vld [vmem:[%s1 + $0x28] sm:$0xff]
        %v176 = vld [vmem:[%s1 + $0x30] sm:$0xff]
        %v177 = vld [vmem:[%s1 + $0x38] sm:$0xff]
        %v186 = vunpack.c.l.b16 %v170
        %v187 = vunpack.c.h.b16 %v170
        %v188 = vunpack.c.l.b16 %v171
        %v189 = vunpack.c.h.b16 %v171
        %v190 = vunpack.c.l.b16 %v172
        %v191 = vunpack.c.h.b16 %v172
        %v192 = vunpack.c.l.b16 %v173
        %v193 = vunpack.c.h.b16 %v173
        %v194 = vunpack.c.l.b16 %v174
        %v195 = vunpack.c.h.b16 %v174
        %v196 = vunpack.c.l.b16 %v175
        %v197 = vunpack.c.h.b16 %v175
        %v198 = vunpack.c.l.b16 %v176
        %v199 = vunpack.c.h.b16 %v176
        %v200 = vunpack.c.l.b16 %v177
        %v201 = vunpack.c.h.b16 %v177
        %v202 = vpack.c.b16 %v188, %v186
        %v203 = vpack.c.b16 %v189, %v187
        %v204 = vpack.c.b16 %v192, %v190
        %v205 = vpack.c.b16 %v193, %v191
        %v206 = vpack.c.b16 %v196, %v194
        %v207 = vpack.c.b16 %v197, %v195
        %v208 = vpack.c.b16 %v200, %v198
        %v209 = vpack.c.b16 %v201, %v199
        %vm218 = vcmask 523264
        %v220 = vsel %vm218, %v162, 0
        %v223 = vsel %vm218, %v163, 0
        %v226 = vsel %vm218, %v164, 0
        %v229 = vsel %vm218, %v165, 0
        %v232 = vsel %vm218, %v166, 0
        %v235 = vsel %vm218, %v167, 0
        %v238 = vsel %vm218, %v168, 0
        %v241 = vsel %vm218, %v169, 0
        %243 = vmatprep.subr.bf16.mxu0 %v203
        %244 = vmatpush1.bf16.msra.mxu0 %v202
        %245 = vmatprep.subr.bf16.mxu0 %v205
        %246 = vmatpush1.bf16.msra.mxu0 %v204
        %247 = vmatprep.subr.bf16.mxu0 %v207
        %248 = vmatpush1.bf16.msra.mxu0 %v206
        %249 = vmatprep.subr.bf16.mxu0 %v209
        %250 = vmatpush1.bf16.msra.mxu0 %v208
        %251 = vmatprep.subr.bf16.mxu0 0
        %252 = vmatpush1.bf16.msra.mxu0 0
        %253 = vmatprep.subr.bf16.mxu0 0
        %254 = vmatpush1.bf16.msra.mxu0 0
        %255 = vmatprep.subr.bf16.mxu0 0
        %256 = vmatpush1.bf16.msra.mxu0 0
        %257 = vmatprep.subr.bf16.mxu0 0
        %258 = vmatpush1.bf16.msra.mxu0 0
        %259 = vmatprep.subr.bf16.mxu0 0
        %260 = vmatpush1.bf16.msra.mxu0 0
        %261 = vmatprep.subr.bf16.mxu0 0
        %262 = vmatpush1.bf16.msra.mxu0 0
        %263 = vmatprep.subr.bf16.mxu0 0
        %264 = vmatpush1.bf16.msra.mxu0 0
        %265 = vmatprep.subr.bf16.mxu0 0
        %266 = vmatpush1.bf16.msra.mxu0 0
        %267 = vmatprep.subr.bf16.mxu0 0
        %268 = vmatpush1.bf16.msra.mxu0 0
        %269 = vmatprep.subr.bf16.mxu0 0
        %270 = vmatpush1.bf16.msra.mxu0 0
        %271 = vmatprep.subr.bf16.mxu0 0
        %272 = vmatpush1.bf16.msra.mxu0 0
        %273 = vmatprep.subr.bf16.mxu0 0
        %274 = vmatpush1.bf16.msra.mxu0 0
        %275 = vmatprep.mubr.bf16.mxu0 0
        %276 = vmatmul.mubr.bf16.gmra.mrb[0].mxu0 %v220
        %v277 = vpop.f32.mrb[0].mxu0
        %v278 = vadd.f32 0.0, %v277
        %v279 = vpop.f32.mrb[0].mxu0
        %v280 = vadd.f32 0.0, %v279
        %v281 = vpop.f32.mrb[0].mxu0
        %v282 = vadd.f32 0.0, %v281
        %v283 = vpop.f32.mrb[0].mxu0
        %v284 = vadd.f32 0.0, %v283
        %285 = vmatprep.mubr.bf16.mxu0 0
        %286 = vmatmul.mubr.bf16.gmra.mrb[0].mxu0 %v223
        %v287 = vpop.f32.mrb[0].mxu0
        %v288 = vadd.f32 0.0, %v287
        %v289 = vpop.f32.mrb[0].mxu0
        %v290 = vadd.f32 0.0, %v289
        %v291 = vpop.f32.mrb[0].mxu0
        %v292 = vadd.f32 0.0, %v291
        %v293 = vpop.f32.mrb[0].mxu0
        %v294 = vadd.f32 0.0, %v293
        %295 = vmatprep.mubr.bf16.mxu0 0
        %296 = vmatmul.mubr.bf16.gmra.mrb[0].mxu0 %v226
        %v297 = vpop.f32.mrb[0].mxu0
        %v298 = vadd.f32 0.0, %v297
        %v299 = vpop.f32.mrb[0].mxu0
        %v300 = vadd.f32 0.0, %v299
        %v301 = vpop.f32.mrb[0].mxu0
        %v302 = vadd.f32 0.0, %v301
        %v303 = vpop.f32.mrb[0].mxu0
        %v304 = vadd.f32 0.0, %v303
        %305 = vmatprep.mubr.bf16.mxu0 0
        %306 = vmatmul.mubr.bf16.gmra.mrb[0].mxu0 %v229
        %v307 = vpop.f32.mrb[0].mxu0
        %v308 = vadd.f32 0.0, %v307
        %v309 = vpop.f32.mrb[0].mxu0
        %v310 = vadd.f32 0.0, %v309
        %v311 = vpop.f32.mrb[0].mxu0
        %v312 = vadd.f32 0.0, %v311
        %v313 = vpop.f32.mrb[0].mxu0
        %v314 = vadd.f32 0.0, %v313
        %315 = vmatprep.mubr.bf16.mxu0 0
        %316 = vmatmul.mubr.bf16.gmra.mrb[0].mxu0 %v232
        %v317 = vpop.f32.mrb[0].mxu0
        %v318 = vadd.f32 0.0, %v317
        %v319 = vpop.f32.mrb[0].mxu0
        %v320 = vadd.f32 0.0, %v319
        %v321 = vpop.f32.mrb[0].mxu0
        %v322 = vadd.f32 0.0, %v321
        %v323 = vpop.f32.mrb[0].mxu0
        %v324 = vadd.f32 0.0, %v323
        %325 = vmatprep.mubr.bf16.mxu0 0
        %326 = vmatmul.mubr.bf16.gmra.mrb[0].mxu0 %v235
        %v327 = vpop.f32.mrb[0].mxu0
        %v328 = vadd.f32 0.0, %v327
        %v329 = vpop.f32.mrb[0].mxu0
        %v330 = vadd.f32 0.0, %v329
        %v331 = vpop.f32.mrb[0].mxu0
        %v332 = vadd.f32 0.0, %v331
        %v333 = vpop.f32.mrb[0].mxu0
        %v334 = vadd.f32 0.0, %v333
        %335 = vmatprep.mubr.bf16.mxu0 0
        %336 = vmatmul.mubr.bf16.gmra.mrb[0].mxu0 %v238
        %v337 = vpop.f32.mrb[0].mxu0
        %v338 = vadd.f32 0.0, %v337
        %v339 = vpop.f32.mrb[0].mxu0
        %v340 = vadd.f32 0.0, %v339
        %v341 = vpop.f32.mrb[0].mxu0
        %v342 = vadd.f32 0.0, %v341
        %v343 = vpop.f32.mrb[0].mxu0
        %v344 = vadd.f32 0.0, %v343
        %345 = vmatprep.mubr.bf16.mxu0 0
        %346 = vmatmul.mubr.bf16.gmra.mrb[0].mxu0 %v241
        %v347 = vpop.f32.mrb[0].mxu0
        %v348 = vadd.f32 0.0, %v347
        %v349 = vpop.f32.mrb[0].mxu0
        %v350 = vadd.f32 0.0, %v349
        %v351 = vpop.f32.mrb[0].mxu0
        %v352 = vadd.f32 0.0, %v351
        %v353 = vpop.f32.mrb[0].mxu0
        %v354 = vadd.f32 0.0, %v353
        %355 = vdwg.mxu0
        %356 = vst [vmem:[%s137] sm:$0xff] %v278
        %357 = vst [vmem:[%s137 + $0x8] sm:$0xff] %v280
        %358 = vst [vmem:[%s137 + $0x10] sm:$0xff] %v282
        %359 = vst [vmem:[%s137 + $0x18] sm:$0xff] %v284
        %360 = vst [vmem:[%s137 + $0x20] sm:$0xff] %v288
        %361 = vst [vmem:[%s137 + $0x28] sm:$0xff] %v290
        %362 = vst [vmem:[%s137 + $0x30] sm:$0xff] %v292
        %363 = vst [vmem:[%s137 + $0x38] sm:$0xff] %v294
        %364 = vst [vmem:[%s137 + $0x40] sm:$0xff] %v298
        %365 = vst [vmem:[%s137 + $0x48] sm:$0xff] %v300
        %366 = vst [vmem:[%s137 + $0x50] sm:$0xff] %v302
        %367 = vst [vmem:[%s137 + $0x58] sm:$0xff] %v304
        %368 = vst [vmem:[%s137 + $0x60] sm:$0xff] %v308
        %369 = vst [vmem:[%s137 + $0x68] sm:$0xff] %v310
        %370 = vst [vmem:[%s137 + $0x70] sm:$0xff] %v312
        %371 = vst [vmem:[%s137 + $0x78] sm:$0xff] %v314
        %372 = vst [vmem:[%s137 + $0x80] sm:$0xff] %v318
        %373 = vst [vmem:[%s137 + $0x88] sm:$0xff] %v320
        %374 = vst [vmem:[%s137 + $0x90] sm:$0xff] %v322
        %375 = vst [vmem:[%s137 + $0x98] sm:$0xff] %v324
        %376 = vst [vmem:[%s137 + $0xa0] sm:$0xff] %v328
        %377 = vst [vmem:[%s137 + $0xa8] sm:$0xff] %v330
        %378 = vst [vmem:[%s137 + $0xb0] sm:$0xff] %v332
        %379 = vst [vmem:[%s137 + $0xb8] sm:$0xff] %v334
        %380 = vst [vmem:[%s137 + $0xc0] sm:$0xff] %v338
        %381 = vst [vmem:[%s137 + $0xc8] sm:$0xff] %v340
        %382 = vst [vmem:[%s137 + $0xd0] sm:$0xff] %v342
        %383 = vst [vmem:[%s137 + $0xd8] sm:$0xff] %v344
        %384 = vst [vmem:[%s137 + $0xe0] sm:$0xff] %v348
        %385 = vst [vmem:[%s137 + $0xe8] sm:$0xff] %v350
        %386 = vst [vmem:[%s137 + $0xf0] sm:$0xff] %v352
        %387 = vst [vmem:[%s137 + $0xf8] sm:$0xff] %v354
        %s388 = sand.u32 %s71, 1
        %s389 = scalar_lea.sflag [#allocation3], %s388
        %s390 = sand.u32 %s71, 1
        %s391 = smul.addr %s390, 256
        %s392 = scalar_lea.vmem [#allocation2], %s391
        // Predicated region
        $region29: #{tpu_custom_call.1} parent=27 // pred_check
          %p393 = pneg %p81
        $region30: #{tpu_custom_call.1} parent=27 // pred_check_branch
          %395 = sbr.rel (%p393) target = $region32
        $region31: #{tpu_custom_call.1} parent=27 // pred_region
          %s396 = smul.u32 16, %s16
          %s398 = ssub.s32 4096, 4096
          %399 = vsyncadd %s389, %s398
          %s400 = smul.addr %s396, 2
          %s401 = smul.addr %s400, 128
          %s402 = scalar_lea.hbm %s2, %s401
          %s403 = sshll.u32 %s392, 4
          %s404 = int_to_ptr.vmem [resolvable:$true] %s403
          %409 = dma.vmem_to_hbm [thread:$0]  %s404, 4096, %s402, %s389, 256, 256, 16
        $region32: #{tpu_custom_call.1} parent=27 // pred_fallthru
          _
      $region28: #{tpu_custom_call.1} parent=5 // pred_fallthru
        _
      %p410 = scmp.le.s32.totalorder 2, %s11
      // Predicated region
      $region33: #{tpu_custom_call.1} parent=5 // pred_check
        %p411 = pneg %p410
      $region34: #{tpu_custom_call.1} parent=5 // pred_check_branch
        %413 = sbr.rel (%p411) target = $region36
      $region35: #{tpu_custom_call.1} parent=5 // pred_region
        %s414 = ssub.s32 %s11, 2
        // Predicated region
        $region37: #{tpu_custom_call.1} parent=35 // pred_check
          %p415 = pneg %p87
        $region38: #{tpu_custom_call.1} parent=35 // pred_check_branch
          %417 = sbr.rel (%p415) target = $region40
        $region39: #{tpu_custom_call.1} parent=35 // pred_region
          %s418 = sand.u32 %s72, 1
          %s419 = scalar_lea.sflag [#allocation3], %s418
          %s420 = sand.u32 %s72, 1
          %s421 = smul.addr %s420, 256
          %s422 = scalar_lea.vmem [#allocation2], %s421
          %423 = dma.done %s419, 4096
        $region40: #{tpu_custom_call.1} parent=35 // pred_fallthru
          _
      $region36: #{tpu_custom_call.1} parent=5 // pred_fallthru
        _
    $region6: #{tpu_custom_call.1} parent=1 // loop_footer
      %s15 = sadd.s32 1, %s11
    $region7: #{tpu_custom_call.1} parent=1 // loop_footer_branch
      %10 = sbr.rel target = $region3
    $region8: #{tpu_custom_call.1} parent=1 // loop_exit
      _
    %424 = vsyncpa [#allocation3], 1
    %s425 = scalar_lea.sflag [#allocation3], 1
    %426 = vsyncpa %s425, 1

</llo_original>
